<compile_context>
chip_gen: v7x
topology: tpu7x:2x2x1
jax: 0.10.0
libtpu: 0.0.40
codegen_flags: <defaults>
</compile_context>

<pallas_src>
import jax
import jax.numpy as jnp
from jax.experimental import pallas as pl
from jax.experimental.pallas import tpu as pltpu


def rnn_head_kernel(x_ref, wih_ref, whh_ref, b_ref, wo_ref, bo_ref,
                    out_ref, h_ref):
    """One T-tile of the RNN(layer 0) recurrence + Linear head + LogSoftmax.

    x_ref  : (B, Tt, D)  batch-first tile of the input sequence
    wih_ref: (D, H)      W_ih^T
    whh_ref: (H, H)      W_hh^T
    b_ref  : (1, H)      b_ih + b_hh
    wo_ref : (H, O)      W_out^T
    bo_ref : (1, O)      b_out
    out_ref: (B, O)      log-softmax(logits)  (written on last grid step)
    h_ref  : (B, H)      VMEM scratch carrying h across grid steps
    """
    B, Tt, D = x_ref.shape
    H = whh_ref.shape[1]
    t_idx = pl.program_id(0)

    # h_0 = 0 (PyTorch default when no initial hidden state is supplied).
    @pl.when(t_idx == 0)
    def _():
        h_ref[...] = jnp.zeros_like(h_ref)

    # Hoisted input projection: one well-shaped matmul for the whole tile,
    # bias broadcast once.
    x_flat = x_ref[...].reshape(B * Tt, D)
    xproj = (jnp.dot(x_flat, wih_ref[...],
                     preferred_element_type=jnp.float32)
             + b_ref[...])                                # (B*Tt, H)
    xproj = xproj.reshape(B, Tt, H)

    # Serial recurrence; h lives in vregs, loop statically unrolled (Tt small
    # and static) so the LLO scheduler can pipeline across timesteps.
    h = h_ref[...]
    for t in range(Tt):
        h = jnp.tanh(xproj[:, t, :]
                     + jnp.dot(h, whh_ref[...],
                               preferred_element_type=jnp.float32))
    h_ref[...] = h

    # Linear head on hidden[0] + numerically stable log-softmax (last dim).
    @pl.when(t_idx == pl.num_programs(0) - 1)
    def _():
        logits = (jnp.dot(h, wo_ref[...],
                          preferred_element_type=jnp.float32)
                  + bo_ref[...])                          # (B, O)
        z = logits - jnp.max(logits, axis=-1, keepdims=True)
        out_ref[...] = z - jnp.log(jnp.sum(jnp.exp(z), axis=-1, keepdims=True))


def _pick_t_tile(T, max_unroll=32):
    """Largest T-tile <= max_unroll that divides T and satisfies the (8,128)
    block constraint (tile % 8 == 0 or tile == T)."""
    for cand in range(min(T, max_unroll), 0, -1):
        if T % cand == 0 and (cand % 8 == 0 or cand == T):
            return cand
    return T


def rnn_model_forward(x, params, *, t_tile=None):
    """x: (B, T, D) batch-first, float32.  Returns (B, O) log-probs."""
    B, T, D = x.shape
    H = params["w_hh_l0"].shape[0]
    O = params["w_out"].shape[0]

    if t_tile is None:
        t_tile = _pick_t_tile(T)
    if T % t_tile != 0:
        t_tile = T
    n_t = T // t_tile

    wih = jnp.transpose(params["w_ih_l0"])                   # (D, H)
    whh = jnp.transpose(params["w_hh_l0"])                   # (H, H)
    b = (params["b_ih_l0"] + params["b_hh_l0"]).reshape(1, H)
    wo = jnp.transpose(params["w_out"])                      # (H, O)
    bo = params["b_out"].reshape(1, O)

    vmem_full = pl.BlockSpec(memory_space=pltpu.MemorySpace.VMEM)
    return pl.pallas_call(
        rnn_head_kernel,
        out_shape=jax.ShapeDtypeStruct((B, O), jnp.float32),
        grid=(n_t,),
        in_specs=[
            pl.BlockSpec((B, t_tile, D), lambda t: (0, t, 0)),  # stream x over T
            vmem_full,   # W_ih^T
            vmem_full,   # W_hh^T
            vmem_full,   # bias
            vmem_full,   # W_out^T
            vmem_full,   # b_out
        ],
        out_specs=pl.BlockSpec((B, O), lambda t: (0, 0)),
        scratch_shapes=[pltpu.VMEM((B, H), jnp.float32)],
        compiler_params=pltpu.CompilerParams(
            dimension_semantics=("arbitrary",)),
    )(x, wih, whh, b, wo, bo)


def ref_forward(x, params):
    """Pure-JAX reference matching the PyTorch forward (eval semantics)."""
    B, T, D = x.shape
    H = params["w_hh_l0"].shape[0]
    h = jnp.zeros((B, H), jnp.float32)
    for t in range(T):
        h = jnp.tanh(x[:, t, :] @ params["w_ih_l0"].T + params["b_ih_l0"]
                     + h @ params["w_hh_l0"].T + params["b_hh_l0"])
    logits = h @ params["w_out"].T + params["b_out"]
    return jax.nn.log_softmax(logits, axis=-1)


def init_params(key, input_dim, hidden_dim, output_dim, n_layers):
    """Deterministic init mirroring the shapes created by the module's __init__."""
    bound = 1.0 / jnp.sqrt(hidden_dim)
    ks = jax.random.split(key, 4 * n_layers + 2)
    params = {}
    ki = 0
    for layer in range(n_layers):
        in_d = input_dim if layer == 0 else hidden_dim
        params[f"w_ih_l{layer}"] = jax.random.uniform(
            ks[ki], (hidden_dim, in_d), jnp.float32, -bound, bound); ki += 1
        params[f"w_hh_l{layer}"] = jax.random.uniform(
            ks[ki], (hidden_dim, hidden_dim), jnp.float32, -bound, bound); ki += 1
        params[f"b_ih_l{layer}"] = jax.random.uniform(
            ks[ki], (hidden_dim,), jnp.float32, -bound, bound); ki += 1
        params[f"b_hh_l{layer}"] = jax.random.uniform(
            ks[ki], (hidden_dim,), jnp.float32, -bound, bound); ki += 1
    params["w_out"] = jax.random.uniform(
        ks[ki], (output_dim, hidden_dim), jnp.float32, -bound, bound); ki += 1
    params["b_out"] = jax.random.uniform(
        ks[ki], (output_dim,), jnp.float32, -bound, bound)
    return params


if __name__ == "__main__":
    # Small shapes consistent with the module: text is (batch, seq, input_dim).
    B, T = 4, 8
    INPUT_DIM, HIDDEN_DIM, OUTPUT_DIM, N_LAYERS = 16, 32, 8, 2

    key = jax.random.PRNGKey(0)
    k_x, k_p = jax.random.split(key)
    x = jax.random.normal(k_x, (B, T, INPUT_DIM), jnp.float32)
    params = init_params(k_p, INPUT_DIM, HIDDEN_DIM, OUTPUT_DIM, N_LAYERS)

    out = rnn_model_forward(x, params)
    out = jax.block_until_ready(out)

    ref = ref_forward(x, params)
    assert out.shape == (B, OUTPUT_DIM)
    assert jnp.allclose(out, ref, atol=1e-5, rtol=1e-5), "mismatch vs reference"
    print("KERNEL_OK")
</pallas_src>

<mosaic_0001>
module attributes {stable_mosaic.version = 11 : i64} {
  func.func @rnn_head_kernel(%arg0: i32, %arg1: memref<4x8x16xf32, #tpu.memory_space<vmem>>, %arg2: memref<16x32xf32, #tpu.memory_space<vmem>>, %arg3: memref<32x32xf32, #tpu.memory_space<vmem>>, %arg4: memref<1x32xf32, #tpu.memory_space<vmem>>, %arg5: memref<32x8xf32, #tpu.memory_space<vmem>>, %arg6: memref<1x8xf32, #tpu.memory_space<vmem>>, %arg7: memref<4x8xf32, #tpu.memory_space<vmem>>, %arg8: memref<4x32xf32, #tpu.memory_space<vmem>>) attributes {dimension_semantics = [#tpu.dimension_semantics<arbitrary>], iteration_bounds = array<i64: 1>, scalar_prefetch = 0 : i64, scratch_operands = 1 : i64, tpu.core_type = #tpu.core_type<tc>, window_params = [{transform_indices = @transform_0, window_bounds = array<i64: 4, 8, 16>}, {pipeline_mode = #tpu.pipeline_mode<synchronous>, transform_indices = @transform_1, window_bounds = array<i64: 16, 32>}, {pipeline_mode = #tpu.pipeline_mode<synchronous>, transform_indices = @transform_2, window_bounds = array<i64: 32, 32>}, {pipeline_mode = #tpu.pipeline_mode<synchronous>, transform_indices = @transform_3, window_bounds = array<i64: 1, 32>}, {pipeline_mode = #tpu.pipeline_mode<synchronous>, transform_indices = @transform_4, window_bounds = array<i64: 32, 8>}, {pipeline_mode = #tpu.pipeline_mode<synchronous>, transform_indices = @transform_5, window_bounds = array<i64: 1, 8>}, {pipeline_mode = #tpu.pipeline_mode<synchronous>, transform_indices = @transform_6, window_bounds = array<i64: 4, 8>}]} {
    %c0_i32 = arith.constant 0 : i32
    %0 = arith.cmpi eq, %arg0, %c0_i32 : i32
    %1 = arith.extui %0 : i1 to i32
    %c0_i32_0 = arith.constant 0 : i32
    %2 = arith.cmpi ne, %1, %c0_i32_0 : i32
    scf.if %2 {
      %cst_37 = arith.constant 0.000000e+00 : f32
      %64 = vector.broadcast %cst_37 : f32 to vector<4x32xf32>
      %c0_38 = arith.constant 0 : index
      %c0_39 = arith.constant 0 : index
      %65 = vector.load %arg8[%c0_38, %c0_39] : memref<4x32xf32, #tpu.memory_space<vmem>>, vector<4x32xf32>
      tpu.vector_store %arg8[%c0_38, %c0_39], %64 {strides = array<i32>} : memref<4x32xf32, #tpu.memory_space<vmem>>, vector<4x32xf32>,
    } else {
    }
    %c0 = arith.constant 0 : index
    %c0_1 = arith.constant 0 : index
    %c0_2 = arith.constant 0 : index
    %3 = vector.load %arg1[%c0, %c0_1, %c0_2] : memref<4x8x16xf32, #tpu.memory_space<vmem>>, vector<4x8x16xf32>
    %4 = vector.shape_cast %3 : vector<4x8x16xf32> to vector<32x16xf32>
    %c0_3 = arith.constant 0 : index
    %c0_4 = arith.constant 0 : index
    %5 = vector.load %arg2[%c0_3, %c0_4] : memref<16x32xf32, #tpu.memory_space<vmem>>, vector<16x32xf32>
    %cst = arith.constant dense<0.000000e+00> : vector<32x32xf32>
    %6 = tpu.matmul %4, %5, %cst {dimension_numbers = #tpu.dot_dimension_numbers<[1], [0], [0], [1], [0, 0, 1, 1], [], []>} : vector<32x16xf32>, vector<16x32xf32>, vector<32x32xf32> -> vector<32x32xf32>
    %c0_5 = arith.constant 0 : index
    %c0_6 = arith.constant 0 : index
    %7 = vector.load %arg4[%c0_5, %c0_6] : memref<1x32xf32, #tpu.memory_space<vmem>>, vector<1x32xf32>
    %8 = vector.broadcast %7 : vector<1x32xf32> to vector<32x32xf32>
    %9 = arith.addf %6, %8 : vector<32x32xf32>
    %10 = vector.shape_cast %9 : vector<32x32xf32> to vector<4x8x32xf32>
    %c0_7 = arith.constant 0 : index
    %c0_8 = arith.constant 0 : index
    %11 = vector.load %arg8[%c0_7, %c0_8] : memref<4x32xf32, #tpu.memory_space<vmem>>, vector<4x32xf32>
    %12 = vector.extract_strided_slice %10 {offsets = [0, 0, 0], sizes = [4, 1, 32], strides = [1, 1, 1]} : vector<4x8x32xf32> to vector<4x1x32xf32>
    %13 = vector.shape_cast %12 : vector<4x1x32xf32> to vector<4x32xf32>
    %c0_9 = arith.constant 0 : index
    %c0_10 = arith.constant 0 : index
    %14 = vector.load %arg3[%c0_9, %c0_10] : memref<32x32xf32, #tpu.memory_space<vmem>>, vector<32x32xf32>
    %cst_11 = arith.constant dense<0.000000e+00> : vector<4x32xf32>
    %15 = tpu.matmul %11, %14, %cst_11 {dimension_numbers = #tpu.dot_dimension_numbers<[1], [0], [0], [1], [0, 0, 1, 1], [], []>} : vector<4x32xf32>, vector<32x32xf32>, vector<4x32xf32> -> vector<4x32xf32>
    %16 = arith.addf %13, %15 : vector<4x32xf32>
    %17 = math.tanh %16 : vector<4x32xf32>
    %18 = vector.extract_strided_slice %10 {offsets = [0, 1, 0], sizes = [4, 1, 32], strides = [1, 1, 1]} : vector<4x8x32xf32> to vector<4x1x32xf32>
    %19 = vector.shape_cast %18 : vector<4x1x32xf32> to vector<4x32xf32>
    %c0_12 = arith.constant 0 : index
    %c0_13 = arith.constant 0 : index
    %20 = vector.load %arg3[%c0_12, %c0_13] : memref<32x32xf32, #tpu.memory_space<vmem>>, vector<32x32xf32>
    %cst_14 = arith.constant dense<0.000000e+00> : vector<4x32xf32>
    %21 = tpu.matmul %17, %20, %cst_14 {dimension_numbers = #tpu.dot_dimension_numbers<[1], [0], [0], [1], [0, 0, 1, 1], [], []>} : vector<4x32xf32>, vector<32x32xf32>, vector<4x32xf32> -> vector<4x32xf32>
    %22 = arith.addf %19, %21 : vector<4x32xf32>
    %23 = math.tanh %22 : vector<4x32xf32>
    %24 = vector.extract_strided_slice %10 {offsets = [0, 2, 0], sizes = [4, 1, 32], strides = [1, 1, 1]} : vector<4x8x32xf32> to vector<4x1x32xf32>
    %25 = vector.shape_cast %24 : vector<4x1x32xf32> to vector<4x32xf32>
    %c0_15 = arith.constant 0 : index
    %c0_16 = arith.constant 0 : index
    %26 = vector.load %arg3[%c0_15, %c0_16] : memref<32x32xf32, #tpu.memory_space<vmem>>, vector<32x32xf32>
    %cst_17 = arith.constant dense<0.000000e+00> : vector<4x32xf32>
    %27 = tpu.matmul %23, %26, %cst_17 {dimension_numbers = #tpu.dot_dimension_numbers<[1], [0], [0], [1], [0, 0, 1, 1], [], []>} : vector<4x32xf32>, vector<32x32xf32>, vector<4x32xf32> -> vector<4x32xf32>
    %28 = arith.addf %25, %27 : vector<4x32xf32>
    %29 = math.tanh %28 : vector<4x32xf32>
    %30 = vector.extract_strided_slice %10 {offsets = [0, 3, 0], sizes = [4, 1, 32], strides = [1, 1, 1]} : vector<4x8x32xf32> to vector<4x1x32xf32>
    %31 = vector.shape_cast %30 : vector<4x1x32xf32> to vector<4x32xf32>
    %c0_18 = arith.constant 0 : index
    %c0_19 = arith.constant 0 : index
    %32 = vector.load %arg3[%c0_18, %c0_19] : memref<32x32xf32, #tpu.memory_space<vmem>>, vector<32x32xf32>
    %cst_20 = arith.constant dense<0.000000e+00> : vector<4x32xf32>
    %33 = tpu.matmul %29, %32, %cst_20 {dimension_numbers = #tpu.dot_dimension_numbers<[1], [0], [0], [1], [0, 0, 1, 1], [], []>} : vector<4x32xf32>, vector<32x32xf32>, vector<4x32xf32> -> vector<4x32xf32>
    %34 = arith.addf %31, %33 : vector<4x32xf32>
    %35 = math.tanh %34 : vector<4x32xf32>
    %36 = vector.extract_strided_slice %10 {offsets = [0, 4, 0], sizes = [4, 1, 32], strides = [1, 1, 1]} : vector<4x8x32xf32> to vector<4x1x32xf32>
    %37 = vector.shape_cast %36 : vector<4x1x32xf32> to vector<4x32xf32>
    %c0_21 = arith.constant 0 : index
    %c0_22 = arith.constant 0 : index
    %38 = vector.load %arg3[%c0_21, %c0_22] : memref<32x32xf32, #tpu.memory_space<vmem>>, vector<32x32xf32>
    %cst_23 = arith.constant dense<0.000000e+00> : vector<4x32xf32>
    %39 = tpu.matmul %35, %38, %cst_23 {dimension_numbers = #tpu.dot_dimension_numbers<[1], [0], [0], [1], [0, 0, 1, 1], [], []>} : vector<4x32xf32>, vector<32x32xf32>, vector<4x32xf32> -> vector<4x32xf32>
    %40 = arith.addf %37, %39 : vector<4x32xf32>
    %41 = math.tanh %40 : vector<4x32xf32>
    %42 = vector.extract_strided_slice %10 {offsets = [0, 5, 0], sizes = [4, 1, 32], strides = [1, 1, 1]} : vector<4x8x32xf32> to vector<4x1x32xf32>
    %43 = vector.shape_cast %42 : vector<4x1x32xf32> to vector<4x32xf32>
    %c0_24 = arith.constant 0 : index
    %c0_25 = arith.constant 0 : index
    %44 = vector.load %arg3[%c0_24, %c0_25] : memref<32x32xf32, #tpu.memory_space<vmem>>, vector<32x32xf32>
    %cst_26 = arith.constant dense<0.000000e+00> : vector<4x32xf32>
    %45 = tpu.matmul %41, %44, %cst_26 {dimension_numbers = #tpu.dot_dimension_numbers<[1], [0], [0], [1], [0, 0, 1, 1], [], []>} : vector<4x32xf32>, vector<32x32xf32>, vector<4x32xf32> -> vector<4x32xf32>
    %46 = arith.addf %43, %45 : vector<4x32xf32>
    %47 = math.tanh %46 : vector<4x32xf32>
    %48 = vector.extract_strided_slice %10 {offsets = [0, 6, 0], sizes = [4, 1, 32], strides = [1, 1, 1]} : vector<4x8x32xf32> to vector<4x1x32xf32>
    %49 = vector.shape_cast %48 : vector<4x1x32xf32> to vector<4x32xf32>
    %c0_27 = arith.constant 0 : index
    %c0_28 = arith.constant 0 : index
    %50 = vector.load %arg3[%c0_27, %c0_28] : memref<32x32xf32, #tpu.memory_space<vmem>>, vector<32x32xf32>
    %cst_29 = arith.constant dense<0.000000e+00> : vector<4x32xf32>
    %51 = tpu.matmul %47, %50, %cst_29 {dimension_numbers = #tpu.dot_dimension_numbers<[1], [0], [0], [1], [0, 0, 1, 1], [], []>} : vector<4x32xf32>, vector<32x32xf32>, vector<4x32xf32> -> vector<4x32xf32>
    %52 = arith.addf %49, %51 : vector<4x32xf32>
    %53 = math.tanh %52 : vector<4x32xf32>
    %54 = vector.extract_strided_slice %10 {offsets = [0, 7, 0], sizes = [4, 1, 32], strides = [1, 1, 1]} : vector<4x8x32xf32> to vector<4x1x32xf32>
    %55 = vector.shape_cast %54 : vector<4x1x32xf32> to vector<4x32xf32>
    %c0_30 = arith.constant 0 : index
    %c0_31 = arith.constant 0 : index
    %56 = vector.load %arg3[%c0_30, %c0_31] : memref<32x32xf32, #tpu.memory_space<vmem>>, vector<32x32xf32>
    %cst_32 = arith.constant dense<0.000000e+00> : vector<4x32xf32>
    %57 = tpu.matmul %53, %56, %cst_32 {dimension_numbers = #tpu.dot_dimension_numbers<[1], [0], [0], [1], [0, 0, 1, 1], [], []>} : vector<4x32xf32>, vector<32x32xf32>, vector<4x32xf32> -> vector<4x32xf32>
    %58 = arith.addf %55, %57 : vector<4x32xf32>
    %59 = math.tanh %58 : vector<4x32xf32>
    %c0_33 = arith.constant 0 : index
    %c0_34 = arith.constant 0 : index
    %60 = vector.load %arg8[%c0_33, %c0_34] : memref<4x32xf32, #tpu.memory_space<vmem>>, vector<4x32xf32>
    tpu.vector_store %arg8[%c0_33, %c0_34], %59 {strides = array<i32>} : memref<4x32xf32, #tpu.memory_space<vmem>>, vector<4x32xf32>,
    %c0_i32_35 = arith.constant 0 : i32
    %61 = arith.cmpi eq, %arg0, %c0_i32_35 : i32
    %62 = arith.extui %61 : i1 to i32
    %c0_i32_36 = arith.constant 0 : i32
    %63 = arith.cmpi ne, %62, %c0_i32_36 : i32
    scf.if %63 {
      %c0_37 = arith.constant 0 : index
      %c0_38 = arith.constant 0 : index
      %64 = vector.load %arg5[%c0_37, %c0_38] : memref<32x8xf32, #tpu.memory_space<vmem>>, vector<32x8xf32>
      %cst_39 = arith.constant dense<0.000000e+00> : vector<4x8xf32>
      %65 = tpu.matmul %59, %64, %cst_39 {dimension_numbers = #tpu.dot_dimension_numbers<[1], [0], [0], [1], [0, 0, 1, 1], [], []>} : vector<4x32xf32>, vector<32x8xf32>, vector<4x8xf32> -> vector<4x8xf32>
      %c0_40 = arith.constant 0 : index
      %c0_41 = arith.constant 0 : index
      %66 = vector.load %arg6[%c0_40, %c0_41] : memref<1x8xf32, #tpu.memory_space<vmem>>, vector<1x8xf32>
      %67 = vector.broadcast %66 : vector<1x8xf32> to vector<4x8xf32>
      %68 = arith.addf %65, %67 : vector<4x8xf32>
      %cst_42 = arith.constant dense<0xFF800000> : vector<4xf32>
      %69 = vector.multi_reduction <maximumf>, %68, %cst_42 [1] : vector<4x8xf32> to vector<4xf32>
      %70 = vector.shape_cast %69 : vector<4xf32> to vector<4x1xf32>
      %71 = vector.broadcast %70 : vector<4x1xf32> to vector<4x8xf32>
      %72 = arith.subf %68, %71 : vector<4x8xf32>
      %73 = math.exp %72 : vector<4x8xf32>
      %cst_43 = arith.constant dense<0.000000e+00> : vector<4xf32>
      %74 = vector.multi_reduction <add>, %73, %cst_43 [1] : vector<4x8xf32> to vector<4xf32>
      %75 = vector.shape_cast %74 : vector<4xf32> to vector<4x1xf32>
      %76 = math.log %75 : vector<4x1xf32>
      %77 = vector.broadcast %76 : vector<4x1xf32> to vector<4x8xf32>
      %78 = arith.subf %72, %77 : vector<4x8xf32>
      %c0_44 = arith.constant 0 : index
      %c0_45 = arith.constant 0 : index
      %79 = vector.load %arg7[%c0_44, %c0_45] : memref<4x8xf32, #tpu.memory_space<vmem>>, vector<4x8xf32>
      tpu.vector_store %arg7[%c0_44, %c0_45], %78 {strides = array<i32>} : memref<4x8xf32, #tpu.memory_space<vmem>>, vector<4x8xf32>,
    } else {
    }
    return
  }
  func.func @transform_0(%arg0: i32) -> (i32, i32, i32) {
    %c0_i32 = arith.constant 0 : i32
    %c0_i32_0 = arith.constant 0 : i32
    %c0_i32_1 = arith.constant 0 : i32
    return %c0_i32, %arg0, %c0_i32_0 : i32, i32, i32
  }
  func.func @transform_1(%arg0: i32) -> (i32, i32) {
    %c0_i32 = arith.constant 0 : i32
    %c0_i32_0 = arith.constant 0 : i32
    %c0_i32_1 = arith.constant 0 : i32
    return %c0_i32, %c0_i32_0 : i32, i32
  }
  func.func @transform_2(%arg0: i32) -> (i32, i32) {
    %c0_i32 = arith.constant 0 : i32
    %c0_i32_0 = arith.constant 0 : i32
    %c0_i32_1 = arith.constant 0 : i32
    return %c0_i32, %c0_i32_0 : i32, i32
  }
  func.func @transform_3(%arg0: i32) -> (i32, i32) {
    %c0_i32 = arith.constant 0 : i32
    %c0_i32_0 = arith.constant 0 : i32
    %c0_i32_1 = arith.constant 0 : i32
    return %c0_i32, %c0_i32_0 : i32, i32
  }
  func.func @transform_4(%arg0: i32) -> (i32, i32) {
    %c0_i32 = arith.constant 0 : i32
    %c0_i32_0 = arith.constant 0 : i32
    %c0_i32_1 = arith.constant 0 : i32
    return %c0_i32, %c0_i32_0 : i32, i32
  }
  func.func @transform_5(%arg0: i32) -> (i32, i32) {
    %c0_i32 = arith.constant 0 : i32
    %c0_i32_0 = arith.constant 0 : i32
    %c0_i32_1 = arith.constant 0 : i32
    return %c0_i32, %c0_i32_0 : i32, i32
  }
  func.func @transform_6(%arg0: i32) -> (i32, i32) {
    %c0_i32 = arith.constant 0 : i32
    %c0_i32_0 = arith.constant 0 : i32
    %c0_i32_1 = arith.constant 0 : i32
    return %c0_i32, %c0_i32_0 : i32, i32
  }
}

</mosaic_0001>

<llo_original>
// kernel: tpu_custom_call.1
$region0: #{tpu_custom_call.1}
  #allocation0 [shape = 'u32[]', space=smem, size = 0x4, offset = 0x4, fixed_abs, tag = 'smem constant byte address 0x4 - core index']
  #allocation1 [shape = 'u32[144,128]{1,0:T(1,128)}', space=vmem, size = 0x12000, scoped, tag = 'internal scratch']
  #allocation2 [shape = 'f32[4,32]{1,0:T(4,128)}', space=vmem, size = 0x800, scoped, tag = 'scratch operand']
  %s0 = inlined_call_operand.vmem [shape: f32[4,8,16], index: 0, kind: input, shape index: {}]
  %s1 = inlined_call_operand.hbm [shape: f32[16,32], index: 1, kind: input, shape index: {}]
  %s2 = inlined_call_operand.hbm [shape: f32[32,32], index: 2, kind: input, shape index: {}]
  %s3 = inlined_call_operand.vmem [shape: f32[1,32], index: 3, kind: input, shape index: {}]
  %s4 = inlined_call_operand.vmem [shape: f32[32,8], index: 4, kind: input, shape index: {}]
  %s5 = inlined_call_operand.vmem [shape: f32[1,8], index: 5, kind: input, shape index: {}]
  %s6 = inlined_call_operand.hbm [shape: f32[4,8], index: 6, kind: output, shape index: {}]
  %s7 = sld [smem:[#allocation0]]
  $region50: #{tpu_custom_call.1} parent=0
    _
  %s9 = ssub.s32 1, %s7
  %s10 = scalar_select 0, %s9, %s7
  $region1: #{tpu_custom_call.1} parent=0
    #allocation3 [shape = 'u8[8192]{0}', space=vmem, size = 0x2000, scoped, tag = 'input window, operand 1, single buffered']
    #allocation4 [shape = 's32[1]{0}', space=sflag, size = 0x4, scoped, tag = 'scoped memory for tpu_custom_call.1']
    #allocation5 [shape = 's32[1]{0}', space=sflag, size = 0x4, scoped, tag = 'scoped memory for tpu_custom_call.1']
    #allocation6 [shape = 'u8[16384]{0}', space=vmem, size = 0x4000, scoped, tag = 'input window, operand 2, single buffered']
    #allocation7 [shape = 's32[1]{0}', space=sflag, size = 0x4, scoped, tag = 'scoped memory for tpu_custom_call.1']
    #allocation8 [shape = 'u8[2048]{0}', space=vmem, size = 0x800, scoped, tag = 'output window, operand 0, single buffered']
    %11 = vsyncpa [#allocation4], 0
    %12 = vsyncpa [#allocation7], 0
    %13 = vsyncpa [#allocation5], 0
    // Predicated region
    $region2: #{tpu_custom_call.1} parent=1 // pred_check
      _
    $region3: #{tpu_custom_call.1} parent=1 // pred_check_branch
      %15 = sbr.rel (0) target = $region5
    $region4: #{tpu_custom_call.1} parent=1 // pred_region
      _
    $region5: #{tpu_custom_call.1} parent=1 // pred_fallthru
      _
    // Predicated region
    $region6: #{tpu_custom_call.1} parent=1 // pred_check
      _
    $region7: #{tpu_custom_call.1} parent=1 // pred_check_branch
      %17 = sbr.rel (0) target = $region9
    $region8: #{tpu_custom_call.1} parent=1 // pred_region
      %s19 = ssub.s32 256, 256
      %20 = vsyncadd [#allocation4], %s19
      %s21 = sshll.u32 [#allocation3], 4
      %s22 = int_to_ptr.vmem [resolvable:$true] %s21
      %27 = dma.hbm_to_vmem [thread:$0]  %s1, 256, %s22, [#allocation4], 128, 128, 8
    $region9: #{tpu_custom_call.1} parent=1 // pred_fallthru
      _
    // Predicated region
    $region10: #{tpu_custom_call.1} parent=1 // pred_check
      _
    $region11: #{tpu_custom_call.1} parent=1 // pred_check_branch
      %29 = sbr.rel (0) target = $region13
    $region12: #{tpu_custom_call.1} parent=1 // pred_region
      %s31 = ssub.s32 512, 512
      %32 = vsyncadd [#allocation7], %s31
      %s33 = sshll.u32 [#allocation6], 4
      %s34 = int_to_ptr.vmem [resolvable:$true] %s33
      %39 = dma.hbm_to_vmem [thread:$0]  %s2, 512, %s34, [#allocation7], 128, 128, 8
    $region13: #{tpu_custom_call.1} parent=1 // pred_fallthru
      _
    // Predicated region
    $region14: #{tpu_custom_call.1} parent=1 // pred_check
      _
    $region15: #{tpu_custom_call.1} parent=1 // pred_check_branch
      %41 = sbr.rel (0) target = $region17
    $region16: #{tpu_custom_call.1} parent=1 // pred_region
      _
    $region17: #{tpu_custom_call.1} parent=1 // pred_fallthru
      _
    // Predicated region
    $region18: #{tpu_custom_call.1} parent=1 // pred_check
      _
    $region19: #{tpu_custom_call.1} parent=1 // pred_check_branch
      %43 = sbr.rel (0) target = $region21
    $region20: #{tpu_custom_call.1} parent=1 // pred_region
      _
    $region21: #{tpu_custom_call.1} parent=1 // pred_fallthru
      _
    // Predicated region
    $region22: #{tpu_custom_call.1} parent=1 // pred_check
      _
    $region23: #{tpu_custom_call.1} parent=1 // pred_check_branch
      %45 = sbr.rel (0) target = $region25
    $region24: #{tpu_custom_call.1} parent=1 // pred_region
      _
    $region25: #{tpu_custom_call.1} parent=1 // pred_fallthru
      _
    // Predicated region
    $region26: #{tpu_custom_call.1} parent=1 // pred_check
      _
    $region27: #{tpu_custom_call.1} parent=1 // pred_check_branch
      %47 = sbr.rel (0) target = $region29
    $region28: #{tpu_custom_call.1} parent=1 // pred_region
      %48 = dma.done [#allocation4], 256
    $region29: #{tpu_custom_call.1} parent=1 // pred_fallthru
      _
    // Predicated region
    $region30: #{tpu_custom_call.1} parent=1 // pred_check
      _
    $region31: #{tpu_custom_call.1} parent=1 // pred_check_branch
      %50 = sbr.rel (0) target = $region33
    $region32: #{tpu_custom_call.1} parent=1 // pred_region
      %51 = dma.done [#allocation7], 512
    $region33: #{tpu_custom_call.1} parent=1 // pred_fallthru
      _
    %p52 = scmp.eq.s32.totalorder 0, 0
    // Predicated region
    $region34: #{tpu_custom_call.1} parent=1 // pred_check
      %p53 = pneg %p52
    $region35: #{tpu_custom_call.1} parent=1 // pred_check_branch
      %55 = sbr.rel (%p53) target = $region37
    $region36: #{tpu_custom_call.1} parent=1 // pred_region
      %vm56 = vcmask 257024
      %57 = vst.msk [vmem:[#allocation2] sm:$0xf] %vm56, 0.0
    $region37: #{tpu_custom_call.1} parent=1 // pred_fallthru
      _
    %v58 = vld [vmem:[%s0] sm:$0xff]
    %v59 = vld [vmem:[%s0 + $0x8] sm:$0xff]
    %v60 = vld [vmem:[%s0 + $0x10] sm:$0xff]
    %v61 = vld [vmem:[%s0 + $0x18] sm:$0xff]
    %v62 = vld [vmem:[#allocation3] sm:$0xff]
    %v63 = vld [vmem:[#allocation3 + $0x8] sm:$0xff]
    %v64 = vld [vmem:[%s3] sm:$0x1]
    %v66 = vlaneseq
    %v67 = vshrl.u32 %v66, 7
    %v68 = vsub.s32 0, %v67
    %v69 = vrot.slane %v64, %v68
    %vm71 = vcmask 130048
    %v73 = vsel %vm71, %v58, 0
    %v76 = vsel %vm71, %v59, 0
    %v79 = vsel %vm71, %v60, 0
    %v82 = vsel %vm71, %v61, 0
    %84 = vmatprep.subr.mxu0 0.0
    %85 = vmatpush1.msra.mxu0 %v62
    %86 = vmatprep.subr.mxu0 0.0
    %87 = vmatpush1.msra.mxu0 %v63
    %88 = vmatprep.subr.mxu0 0.0
    %89 = vmatpush1.msra.mxu0 0.0
    %90 = vmatprep.subr.mxu0 0.0
    %91 = vmatpush1.msra.mxu0 0.0
    %92 = vmatprep.subr.mxu0 0.0
    %93 = vmatpush1.msra.mxu0 0.0
    %94 = vmatprep.subr.mxu0 0.0
    %95 = vmatpush1.msra.mxu0 0.0
    %96 = vmatprep.subr.mxu0 0.0
    %97 = vmatpush1.msra.mxu0 0.0
    %98 = vmatprep.subr.mxu0 0.0
    %99 = vmatpush1.msra.mxu0 0.0
    %100 = vmatprep.subr.mxu0 0.0
    %101 = vmatpush1.msra.mxu0 0.0
    %102 = vmatprep.subr.mxu0 0.0
    %103 = vmatpush1.msra.mxu0 0.0
    %104 = vmatprep.subr.mxu0 0.0
    %105 = vmatpush1.msra.mxu0 0.0
    %106 = vmatprep.subr.mxu0 0.0
    %107 = vmatpush1.msra.mxu0 0.0
    %108 = vmatprep.subr.mxu0 0.0
    %109 = vmatpush1.msra.mxu0 0.0
    %110 = vmatprep.subr.mxu0 0.0
    %111 = vmatpush1.msra.mxu0 0.0
    %112 = vmatprep.subr.mxu0 0.0
    %113 = vmatpush1.msra.mxu0 0.0
    %114 = vmatprep.subr.mxu0 0.0
    %115 = vmatpush1.msra.mxu0 0.0
    %116 = vmatprep.subr.mxu0 0.0
    %117 = vmatpush1.msra.mxu0 0.0
    %118 = vmatprep.subr.mxu0 0.0
    %119 = vmatpush1.msra.mxu0 0.0
    %120 = vmatprep.subr.mxu0 0.0
    %121 = vmatpush1.msra.mxu0 0.0
    %122 = vmatprep.subr.mxu0 0.0
    %123 = vmatpush1.msra.mxu0 0.0
    %124 = vmatprep.subr.mxu0 0.0
    %125 = vmatpush1.msra.mxu0 0.0
    %126 = vmatprep.subr.mxu0 0.0
    %127 = vmatpush1.msra.mxu0 0.0
    %128 = vmatprep.subr.mxu0 0.0
    %129 = vmatpush1.msra.mxu0 0.0
    %130 = vmatprep.subr.mxu0 0.0
    %131 = vmatpush1.msra.mxu0 0.0
    %132 = vmatprep.subr.mxu0 0.0
    %133 = vmatpush1.msra.mxu0 0.0
    %134 = vmatprep.subr.mxu0 0.0
    %135 = vmatpush1.msra.mxu0 0.0
    %136 = vmatprep.subr.mxu0 0.0
    %137 = vmatpush1.msra.mxu0 0.0
    %138 = vmatprep.subr.mxu0 0.0
    %139 = vmatpush1.msra.mxu0 0.0
    %140 = vmatprep.subr.mxu0 0.0
    %141 = vmatpush1.msra.mxu0 0.0
    %142 = vmatprep.subr.mxu0 0.0
    %143 = vmatpush1.msra.mxu0 0.0
    %144 = vmatprep.subr.mxu0 0.0
    %145 = vmatpush1.msra.mxu0 0.0
    %146 = vmatprep.subr.mxu0 0.0
    %147 = vmatpush1.msra.mxu0 0.0
    %148 = vmatprep.mubr.f32.mxu0 0.0
    %149 = vmatmul.mubr.f32.gmra.mrb[0].mxu0 %v73
    %v150 = vpop.f32.mrb[0].mxu0
    %v151 = vadd.f32 %v69, %v150
    %v152 = vpop.f32.mrb[0].mxu0
    %153 = vmatprep.mubr.f32.mxu0 0.0
    %154 = vmatmul.mubr.f32.gmra.mrb[0].mxu0 %v76
    %v155 = vpop.f32.mrb[0].mxu0
    %v156 = vadd.f32 %v69, %v155
    %v157 = vpop.f32.mrb[0].mxu0
    %158 = vmatprep.mubr.f32.mxu0 0.0
    %159 = vmatmul.mubr.f32.gmra.mrb[0].mxu0 %v79
    %v160 = vpop.f32.mrb[0].mxu0
    %v161 = vadd.f32 %v69, %v160
    %v162 = vpop.f32.mrb[0].mxu0
    %163 = vmatprep.mubr.f32.mxu0 0.0
    %164 = vmatmul.mubr.f32.gmra.mrb[0].mxu0 %v82
    %v165 = vpop.f32.mrb[0].mxu0
    %v166 = vadd.f32 %v69, %v165
    %v167 = vpop.f32.mrb[0].mxu0
    %168 = vdwg.mxu0
    %v169 = vld [vmem:[#allocation2] sm:$0xf]
    %v170 = vld [vmem:[#allocation6] sm:$0xff]
    %v171 = vld [vmem:[#allocation6 + $0x8] sm:$0xff]
    %v172 = vld [vmem:[#allocation6 + $0x10] sm:$0xff]
    %v173 = vld [vmem:[#allocation6 + $0x18] sm:$0xff]
    %vm174 = vcmask 261120
    %v176 = vsel %vm174, %v169, 0
    %178 = vmatprep.subr.mxu0 0.0
    %179 = vmatpush1.msra.mxu0 %v170
    %180 = vmatprep.subr.mxu0 0.0
    %181 = vmatpush1.msra.mxu0 %v171
    %182 = vmatprep.subr.mxu0 0.0
    %183 = vmatpush1.msra.mxu0 %v172
    %184 = vmatprep.subr.mxu0 0.0
    %185 = vmatpush1.msra.mxu0 %v173
    %186 = vmatprep.subr.mxu0 0.0
    %187 = vmatpush1.msra.mxu0 0.0
    %188 = vmatprep.subr.mxu0 0.0
    %189 = vmatpush1.msra.mxu0 0.0
    %190 = vmatprep.subr.mxu0 0.0
    %191 = vmatpush1.msra.mxu0 0.0
    %192 = vmatprep.subr.mxu0 0.0
    %193 = vmatpush1.msra.mxu0 0.0
    %194 = vmatprep.subr.mxu0 0.0
    %195 = vmatpush1.msra.mxu0 0.0
    %196 = vmatprep.subr.mxu0 0.0
    %197 = vmatpush1.msra.mxu0 0.0
    %198 = vmatprep.subr.mxu0 0.0
    %199 = vmatpush1.msra.mxu0 0.0
    %200 = vmatprep.subr.mxu0 0.0
    %201 = vmatpush1.msra.mxu0 0.0
    %202 = vmatprep.subr.mxu0 0.0
    %203 = vmatpush1.msra.mxu0 0.0
    %204 = vmatprep.subr.mxu0 0.0
    %205 = vmatpush1.msra.mxu0 0.0
    %206 = vmatprep.subr.mxu0 0.0
    %207 = vmatpush1.msra.mxu0 0.0
    %208 = vmatprep.subr.mxu0 0.0
    %209 = vmatpush1.msra.mxu0 0.0
    %210 = vmatprep.subr.mxu0 0.0
    %211 = vmatpush1.msra.mxu0 0.0
    %212 = vmatprep.subr.mxu0 0.0
    %213 = vmatpush1.msra.mxu0 0.0
    %214 = vmatprep.subr.mxu0 0.0
    %215 = vmatpush1.msra.mxu0 0.0
    %216 = vmatprep.subr.mxu0 0.0
    %217 = vmatpush1.msra.mxu0 0.0
    %218 = vmatprep.subr.mxu0 0.0
    %219 = vmatpush1.msra.mxu0 0.0
    %220 = vmatprep.subr.mxu0 0.0
    %221 = vmatpush1.msra.mxu0 0.0
    %222 = vmatprep.subr.mxu0 0.0
    %223 = vmatpush1.msra.mxu0 0.0
    %224 = vmatprep.subr.mxu0 0.0
    %225 = vmatpush1.msra.mxu0 0.0
    %226 = vmatprep.subr.mxu0 0.0
    %227 = vmatpush1.msra.mxu0 0.0
    %228 = vmatprep.subr.mxu0 0.0
    %229 = vmatpush1.msra.mxu0 0.0
    %230 = vmatprep.subr.mxu0 0.0
    %231 = vmatpush1.msra.mxu0 0.0
    %232 = vmatprep.subr.mxu0 0.0
    %233 = vmatpush1.msra.mxu0 0.0
    %234 = vmatprep.subr.mxu0 0.0
    %235 = vmatpush1.msra.mxu0 0.0
    %236 = vmatprep.subr.mxu0 0.0
    %237 = vmatpush1.msra.mxu0 0.0
    %238 = vmatprep.subr.mxu0 0.0
    %239 = vmatpush1.msra.mxu0 0.0
    %240 = vmatprep.subr.mxu0 0.0
    %241 = vmatpush1.msra.mxu0 0.0
    %242 = vmatprep.mubr.f32.mxu0 0.0
    %243 = vmatmul.mubr.f32.gmra.mrb[0].mxu0 %v176
    %v244 = vpop.f32.mrb[0].mxu0
    %v245 = vadd.f32 0.0, %v244
    %v246 = vpop.f32.mrb[0].mxu0
    %247 = vdwg.mxu0
    %v249 = vrot.slane %v245, 1
    %v250 = vrot.slane %v245, 2
    %v251 = vrot.slane %v245, 3
    %v256 = vadd.f32 %v151, %v245
    %v257 = vadd.f32 %v156, %v249
    %v258 = vadd.f32 %v161, %v250
    %v259 = vadd.f32 %v166, %v251
    %v260 = vtanh.pop %v256
    %v261 = vtanh.pop %v257
    %v262 = vtanh.pop %v258
    %v263 = vtanh.pop %v259
    %v268 = vrot.slane %v261, 7
    %vm269 = vcmask 1041409
    %v270 = vsel %vm269, %v268, %v260
    %v271 = vrot.slane %v262, 6
    %vm272 = vcmask 1042434
    %v273 = vsel %vm272, %v271, %v270
    %v274 = vrot.slane %v263, 5
    %vm275 = vcmask 1043459
    %v276 = vsel %vm275, %v274, %v273
    %v277 = vsel %vm174, %v276, 0
    %279 = vmatprep.subr.mxu0 0.0
    %280 = vmatpush1.msra.mxu0 %v170
    %281 = vmatprep.subr.mxu0 0.0
    %282 = vmatpush1.msra.mxu0 %v171
    %283 = vmatprep.subr.mxu0 0.0
    %284 = vmatpush1.msra.mxu0 %v172
    %285 = vmatprep.subr.mxu0 0.0
    %286 = vmatpush1.msra.mxu0 %v173
    %287 = vmatprep.subr.mxu0 0.0
    %288 = vmatpush1.msra.mxu0 0.0
    %289 = vmatprep.subr.mxu0 0.0
    %290 = vmatpush1.msra.mxu0 0.0
    %291 = vmatprep.subr.mxu0 0.0
    %292 = vmatpush1.msra.mxu0 0.0
    %293 = vmatprep.subr.mxu0 0.0
    %294 = vmatpush1.msra.mxu0 0.0
    %295 = vmatprep.subr.mxu0 0.0
    %296 = vmatpush1.msra.mxu0 0.0
    %297 = vmatprep.subr.mxu0 0.0
    %298 = vmatpush1.msra.mxu0 0.0
    %299 = vmatprep.subr.mxu0 0.0
    %300 = vmatpush1.msra.mxu0 0.0
    %301 = vmatprep.subr.mxu0 0.0
    %302 = vmatpush1.msra.mxu0 0.0
    %303 = vmatprep.subr.mxu0 0.0
    %304 = vmatpush1.msra.mxu0 0.0
    %305 = vmatprep.subr.mxu0 0.0
    %306 = vmatpush1.msra.mxu0 0.0
    %307 = vmatprep.subr.mxu0 0.0
    %308 = vmatpush1.msra.mxu0 0.0
    %309 = vmatprep.subr.mxu0 0.0
    %310 = vmatpush1.msra.mxu0 0.0
    %311 = vmatprep.subr.mxu0 0.0
    %312 = vmatpush1.msra.mxu0 0.0
    %313 = vmatprep.subr.mxu0 0.0
    %314 = vmatpush1.msra.mxu0 0.0
    %315 = vmatprep.subr.mxu0 0.0
    %316 = vmatpush1.msra.mxu0 0.0
    %317 = vmatprep.subr.mxu0 0.0
    %318 = vmatpush1.msra.mxu0 0.0
    %319 = vmatprep.subr.mxu0 0.0
    %320 = vmatpush1.msra.mxu0 0.0
    %321 = vmatprep.subr.mxu0 0.0
    %322 = vmatpush1.msra.mxu0 0.0
    %323 = vmatprep.subr.mxu0 0.0
    %324 = vmatpush1.msra.mxu0 0.0
    %325 = vmatprep.subr.mxu0 0.0
    %326 = vmatpush1.msra.mxu0 0.0
    %327 = vmatprep.subr.mxu0 0.0
    %328 = vmatpush1.msra.mxu0 0.0
    %329 = vmatprep.subr.mxu0 0.0
    %330 = vmatpush1.msra.mxu0 0.0
    %331 = vmatprep.subr.mxu0 0.0
    %332 = vmatpush1.msra.mxu0 0.0
    %333 = vmatprep.subr.mxu0 0.0
    %334 = vmatpush1.msra.mxu0 0.0
    %335 = vmatprep.subr.mxu0 0.0
    %336 = vmatpush1.msra.mxu0 0.0
    %337 = vmatprep.subr.mxu0 0.0
    %338 = vmatpush1.msra.mxu0 0.0
    %339 = vmatprep.subr.mxu0 0.0
    %340 = vmatpush1.msra.mxu0 0.0
    %341 = vmatprep.subr.mxu0 0.0
    %342 = vmatpush1.msra.mxu0 0.0
    %343 = vmatprep.mubr.f32.mxu0 0.0
    %344 = vmatmul.mubr.f32.gmra.mrb[0].mxu0 %v277
    %v345 = vpop.f32.mrb[0].mxu0
    %v346 = vadd.f32 0.0, %v345
    %v347 = vpop.f32.mrb[0].mxu0
    %348 = vdwg.mxu0
    %v350 = vrot.slane %v346, 7
    %v351 = vrot.slane %v346, 1
    %v352 = vrot.slane %v346, 2
    %v357 = vadd.f32 %v151, %v350
    %v358 = vadd.f32 %v156, %v346
    %v359 = vadd.f32 %v161, %v351
    %v360 = vadd.f32 %v166, %v352
    %v361 = vtanh.pop %v357
    %v362 = vtanh.pop %v358
    %v363 = vtanh.pop %v359
    %v364 = vtanh.pop %v360
    %v369 = vrot.slane %v361, 1
    %v370 = vsel %vm269, %v362, %v369
    %v371 = vrot.slane %v363, 7
    %v372 = vsel %vm272, %v371, %v370
    %v373 = vrot.slane %v364, 6
    %v374 = vsel %vm275, %v373, %v372
    %v375 = vsel %vm174, %v374, 0
    %377 = vmatprep.subr.mxu0 0.0
    %378 = vmatpush1.msra.mxu0 %v170
    %379 = vmatprep.subr.mxu0 0.0
    %380 = vmatpush1.msra.mxu0 %v171
    %381 = vmatprep.subr.mxu0 0.0
    %382 = vmatpush1.msra.mxu0 %v172
    %383 = vmatprep.subr.mxu0 0.0
    %384 = vmatpush1.msra.mxu0 %v173
    %385 = vmatprep.subr.mxu0 0.0
    %386 = vmatpush1.msra.mxu0 0.0
    %387 = vmatprep.subr.mxu0 0.0
    %388 = vmatpush1.msra.mxu0 0.0
    %389 = vmatprep.subr.mxu0 0.0
    %390 = vmatpush1.msra.mxu0 0.0
    %391 = vmatprep.subr.mxu0 0.0
    %392 = vmatpush1.msra.mxu0 0.0
    %393 = vmatprep.subr.mxu0 0.0
    %394 = vmatpush1.msra.mxu0 0.0
    %395 = vmatprep.subr.mxu0 0.0
    %396 = vmatpush1.msra.mxu0 0.0
    %397 = vmatprep.subr.mxu0 0.0
    %398 = vmatpush1.msra.mxu0 0.0
    %399 = vmatprep.subr.mxu0 0.0
    %400 = vmatpush1.msra.mxu0 0.0
    %401 = vmatprep.subr.mxu0 0.0
    %402 = vmatpush1.msra.mxu0 0.0
    %403 = vmatprep.subr.mxu0 0.0
    %404 = vmatpush1.msra.mxu0 0.0
    %405 = vmatprep.subr.mxu0 0.0
    %406 = vmatpush1.msra.mxu0 0.0
    %407 = vmatprep.subr.mxu0 0.0
    %408 = vmatpush1.msra.mxu0 0.0
    %409 = vmatprep.subr.mxu0 0.0
    %410 = vmatpush1.msra.mxu0 0.0
    %411 = vmatprep.subr.mxu0 0.0
    %412 = vmatpush1.msra.mxu0 0.0
    %413 = vmatprep.subr.mxu0 0.0
    %414 = vmatpush1.msra.mxu0 0.0
    %415 = vmatprep.subr.mxu0 0.0
    %416 = vmatpush1.msra.mxu0 0.0
    %417 = vmatprep.subr.mxu0 0.0
    %418 = vmatpush1.msra.mxu0 0.0
    %419 = vmatprep.subr.mxu0 0.0
    %420 = vmatpush1.msra.mxu0 0.0
    %421 = vmatprep.subr.mxu0 0.0
    %422 = vmatpush1.msra.mxu0 0.0
    %423 = vmatprep.subr.mxu0 0.0
    %424 = vmatpush1.msra.mxu0 0.0
    %425 = vmatprep.subr.mxu0 0.0
    %426 = vmatpush1.msra.mxu0 0.0
    %427 = vmatprep.subr.mxu0 0.0
    %428 = vmatpush1.msra.mxu0 0.0
    %429 = vmatprep.subr.mxu0 0.0
    %430 = vmatpush1.msra.mxu0 0.0
    %431 = vmatprep.subr.mxu0 0.0
    %432 = vmatpush1.msra.mxu0 0.0
    %433 = vmatprep.subr.mxu0 0.0
    %434 = vmatpush1.msra.mxu0 0.0
    %435 = vmatprep.subr.mxu0 0.0
    %436 = vmatpush1.msra.mxu0 0.0
    %437 = vmatprep.subr.mxu0 0.0
    %438 = vmatpush1.msra.mxu0 0.0
    %439 = vmatprep.subr.mxu0 0.0
    %440 = vmatpush1.msra.mxu0 0.0
    %441 = vmatprep.mubr.f32.mxu0 0.0
    %442 = vmatmul.mubr.f32.gmra.mrb[0].mxu0 %v375
    %v443 = vpop.f32.mrb[0].mxu0
    %v444 = vadd.f32 0.0, %v443
    %v445 = vpop.f32.mrb[0].mxu0
    %446 = vdwg.mxu0
    %v448 = vrot.slane %v444, 6
    %v449 = vrot.slane %v444, 7
    %v450 = vrot.slane %v444, 1
    %v455 = vadd.f32 %v151, %v448
    %v456 = vadd.f32 %v156, %v449
    %v457 = vadd.f32 %v161, %v444
    %v458 = vadd.f32 %v166, %v450
    %v459 = vtanh.pop %v455
    %v460 = vtanh.pop %v456
    %v461 = vtanh.pop %v457
    %v462 = vtanh.pop %v458
    %v467 = vrot.slane %v459, 2
    %v468 = vrot.slane %v460, 1
    %v469 = vsel %vm269, %v468, %v467
    %v470 = vsel %vm272, %v461, %v469
    %v471 = vrot.slane %v462, 7
    %v472 = vsel %vm275, %v471, %v470
    %v473 = vsel %vm174, %v472, 0
    %475 = vmatprep.subr.mxu0 0.0
    %476 = vmatpush1.msra.mxu0 %v170
    %477 = vmatprep.subr.mxu0 0.0
    %478 = vmatpush1.msra.mxu0 %v171
    %479 = vmatprep.subr.mxu0 0.0
    %480 = vmatpush1.msra.mxu0 %v172
    %481 = vmatprep.subr.mxu0 0.0
    %482 = vmatpush1.msra.mxu0 %v173
    %483 = vmatprep.subr.mxu0 0.0
    %484 = vmatpush1.msra.mxu0 0.0
    %485 = vmatprep.subr.mxu0 0.0
    %486 = vmatpush1.msra.mxu0 0.0
    %487 = vmatprep.subr.mxu0 0.0
    %488 = vmatpush1.msra.mxu0 0.0
    %489 = vmatprep.subr.mxu0 0.0
    %490 = vmatpush1.msra.mxu0 0.0
    %491 = vmatprep.subr.mxu0 0.0
    %492 = vmatpush1.msra.mxu0 0.0
    %493 = vmatprep.subr.mxu0 0.0
    %494 = vmatpush1.msra.mxu0 0.0
    %495 = vmatprep.subr.mxu0 0.0
    %496 = vmatpush1.msra.mxu0 0.0
    %497 = vmatprep.subr.mxu0 0.0
    %498 = vmatpush1.msra.mxu0 0.0
    %499 = vmatprep.subr.mxu0 0.0
    %500 = vmatpush1.msra.mxu0 0.0
    %501 = vmatprep.subr.mxu0 0.0
    %502 = vmatpush1.msra.mxu0 0.0
    %503 = vmatprep.subr.mxu0 0.0
    %504 = vmatpush1.msra.mxu0 0.0
    %505 = vmatprep.subr.mxu0 0.0
    %506 = vmatpush1.msra.mxu0 0.0
    %507 = vmatprep.subr.mxu0 0.0
    %508 = vmatpush1.msra.mxu0 0.0
    %509 = vmatprep.subr.mxu0 0.0
    %510 = vmatpush1.msra.mxu0 0.0
    %511 = vmatprep.subr.mxu0 0.0
    %512 = vmatpush1.msra.mxu0 0.0
    %513 = vmatprep.subr.mxu0 0.0
    %514 = vmatpush1.msra.mxu0 0.0
    %515 = vmatprep.subr.mxu0 0.0
    %516 = vmatpush1.msra.mxu0 0.0
    %517 = vmatprep.subr.mxu0 0.0
    %518 = vmatpush1.msra.mxu0 0.0
    %519 = vmatprep.subr.mxu0 0.0
    %520 = vmatpush1.msra.mxu0 0.0
    %521 = vmatprep.subr.mxu0 0.0
    %522 = vmatpush1.msra.mxu0 0.0
    %523 = vmatprep.subr.mxu0 0.0
    %524 = vmatpush1.msra.mxu0 0.0
    %525 = vmatprep.subr.mxu0 0.0
    %526 = vmatpush1.msra.mxu0 0.0
    %527 = vmatprep.subr.mxu0 0.0
    %528 = vmatpush1.msra.mxu0 0.0
    %529 = vmatprep.subr.mxu0 0.0
    %530 = vmatpush1.msra.mxu0 0.0
    %531 = vmatprep.subr.mxu0 0.0
    %532 = vmatpush1.msra.mxu0 0.0
    %533 = vmatprep.subr.mxu0 0.0
    %534 = vmatpush1.msra.mxu0 0.0
    %535 = vmatprep.subr.mxu0 0.0
    %536 = vmatpush1.msra.mxu0 0.0
    %537 = vmatprep.subr.mxu0 0.0
    %538 = vmatpush1.msra.mxu0 0.0
    %539 = vmatprep.mubr.f32.mxu0 0.0
    %540 = vmatmul.mubr.f32.gmra.mrb[0].mxu0 %v473
    %v541 = vpop.f32.mrb[0].mxu0
    %v542 = vadd.f32 0.0, %v541
    %v543 = vpop.f32.mrb[0].mxu0
    %544 = vdwg.mxu0
    %v546 = vrot.slane %v542, 5
    %v547 = vrot.slane %v542, 6
    %v548 = vrot.slane %v542, 7
    %v553 = vadd.f32 %v151, %v546
    %v554 = vadd.f32 %v156, %v547
    %v555 = vadd.f32 %v161, %v548
    %v556 = vadd.f32 %v166, %v542
    %v557 = vtanh.pop %v553
    %v558 = vtanh.pop %v554
    %v559 = vtanh.pop %v555
    %v560 = vtanh.pop %v556
    %v565 = vrot.slane %v557, 3
    %v566 = vrot.slane %v558, 2
    %v567 = vsel %vm269, %v566, %v565
    %v568 = vrot.slane %v559, 1
    %v569 = vsel %vm272, %v568, %v567
    %v570 = vsel %vm275, %v560, %v569
    %v571 = vsel %vm174, %v570, 0
    %573 = vmatprep.subr.mxu0 0.0
    %574 = vmatpush1.msra.mxu0 %v170
    %575 = vmatprep.subr.mxu0 0.0
    %576 = vmatpush1.msra.mxu0 %v171
    %577 = vmatprep.subr.mxu0 0.0
    %578 = vmatpush1.msra.mxu0 %v172
    %579 = vmatprep.subr.mxu0 0.0
    %580 = vmatpush1.msra.mxu0 %v173
    %581 = vmatprep.subr.mxu0 0.0
    %582 = vmatpush1.msra.mxu0 0.0
    %583 = vmatprep.subr.mxu0 0.0
    %584 = vmatpush1.msra.mxu0 0.0
    %585 = vmatprep.subr.mxu0 0.0
    %586 = vmatpush1.msra.mxu0 0.0
    %587 = vmatprep.subr.mxu0 0.0
    %588 = vmatpush1.msra.mxu0 0.0
    %589 = vmatprep.subr.mxu0 0.0
    %590 = vmatpush1.msra.mxu0 0.0
    %591 = vmatprep.subr.mxu0 0.0
    %592 = vmatpush1.msra.mxu0 0.0
    %593 = vmatprep.subr.mxu0 0.0
    %594 = vmatpush1.msra.mxu0 0.0
    %595 = vmatprep.subr.mxu0 0.0
    %596 = vmatpush1.msra.mxu0 0.0
    %597 = vmatprep.subr.mxu0 0.0
    %598 = vmatpush1.msra.mxu0 0.0
    %599 = vmatprep.subr.mxu0 0.0
    %600 = vmatpush1.msra.mxu0 0.0
    %601 = vmatprep.subr.mxu0 0.0
    %602 = vmatpush1.msra.mxu0 0.0
    %603 = vmatprep.subr.mxu0 0.0
    %604 = vmatpush1.msra.mxu0 0.0
    %605 = vmatprep.subr.mxu0 0.0
    %606 = vmatpush1.msra.mxu0 0.0
    %607 = vmatprep.subr.mxu0 0.0
    %608 = vmatpush1.msra.mxu0 0.0
    %609 = vmatprep.subr.mxu0 0.0
    %610 = vmatpush1.msra.mxu0 0.0
    %611 = vmatprep.subr.mxu0 0.0
    %612 = vmatpush1.msra.mxu0 0.0
    %613 = vmatprep.subr.mxu0 0.0
    %614 = vmatpush1.msra.mxu0 0.0
    %615 = vmatprep.subr.mxu0 0.0
    %616 = vmatpush1.msra.mxu0 0.0
    %617 = vmatprep.subr.mxu0 0.0
    %618 = vmatpush1.msra.mxu0 0.0
    %619 = vmatprep.subr.mxu0 0.0
    %620 = vmatpush1.msra.mxu0 0.0
    %621 = vmatprep.subr.mxu0 0.0
    %622 = vmatpush1.msra.mxu0 0.0
    %623 = vmatprep.subr.mxu0 0.0
    %624 = vmatpush1.msra.mxu0 0.0
    %625 = vmatprep.subr.mxu0 0.0
    %626 = vmatpush1.msra.mxu0 0.0
    %627 = vmatprep.subr.mxu0 0.0
    %628 = vmatpush1.msra.mxu0 0.0
    %629 = vmatprep.subr.mxu0 0.0
    %630 = vmatpush1.msra.mxu0 0.0
    %631 = vmatprep.subr.mxu0 0.0
    %632 = vmatpush1.msra.mxu0 0.0
    %633 = vmatprep.subr.mxu0 0.0
    %634 = vmatpush1.msra.mxu0 0.0
    %635 = vmatprep.subr.mxu0 0.0
    %636 = vmatpush1.msra.mxu0 0.0
    %637 = vmatprep.mubr.f32.mxu0 0.0
    %638 = vmatmul.mubr.f32.gmra.mrb[0].mxu0 %v571
    %v639 = vpop.f32.mrb[0].mxu0
    %v640 = vadd.f32 0.0, %v639
    %v641 = vpop.f32.mrb[0].mxu0
    %642 = vdwg.mxu0
    %v644 = vrot.slane %v640, 4
    %v645 = vrot.slane %v640, 5
    %v646 = vrot.slane %v640, 6
    %v647 = vrot.slane %v640, 7
    %v652 = vadd.f32 %v151, %v644
    %v653 = vadd.f32 %v156, %v645
    %v654 = vadd.f32 %v161, %v646
    %v655 = vadd.f32 %v166, %v647
    %v656 = vtanh.pop %v652
    %v657 = vtanh.pop %v653
    %v658 = vtanh.pop %v654
    %v659 = vtanh.pop %v655
    %v664 = vrot.slane %v656, 4
    %v665 = vrot.slane %v657, 3
    %v666 = vsel %vm269, %v665, %v664
    %v667 = vrot.slane %v658, 2
    %v668 = vsel %vm272, %v667, %v666
    %v669 = vrot.slane %v659, 1
    %v670 = vsel %vm275, %v669, %v668
    %v671 = vsel %vm174, %v670, 0
    %673 = vmatprep.subr.mxu0 0.0
    %674 = vmatpush1.msra.mxu0 %v170
    %675 = vmatprep.subr.mxu0 0.0
    %676 = vmatpush1.msra.mxu0 %v171
    %677 = vmatprep.subr.mxu0 0.0
    %678 = vmatpush1.msra.mxu0 %v172
    %679 = vmatprep.subr.mxu0 0.0
    %680 = vmatpush1.msra.mxu0 %v173
    %681 = vmatprep.subr.mxu0 0.0
    %682 = vmatpush1.msra.mxu0 0.0
    %683 = vmatprep.subr.mxu0 0.0
    %684 = vmatpush1.msra.mxu0 0.0
    %685 = vmatprep.subr.mxu0 0.0
    %686 = vmatpush1.msra.mxu0 0.0
    %687 = vmatprep.subr.mxu0 0.0
    %688 = vmatpush1.msra.mxu0 0.0
    %689 = vmatprep.subr.mxu0 0.0
    %690 = vmatpush1.msra.mxu0 0.0
    %691 = vmatprep.subr.mxu0 0.0
    %692 = vmatpush1.msra.mxu0 0.0
    %693 = vmatprep.subr.mxu0 0.0
    %694 = vmatpush1.msra.mxu0 0.0
    %695 = vmatprep.subr.mxu0 0.0
    %696 = vmatpush1.msra.mxu0 0.0
    %697 = vmatprep.subr.mxu0 0.0
    %698 = vmatpush1.msra.mxu0 0.0
    %699 = vmatprep.subr.mxu0 0.0
    %700 = vmatpush1.msra.mxu0 0.0
    %701 = vmatprep.subr.mxu0 0.0
    %702 = vmatpush1.msra.mxu0 0.0
    %703 = vmatprep.subr.mxu0 0.0
    %704 = vmatpush1.msra.mxu0 0.0
    %705 = vmatprep.subr.mxu0 0.0
    %706 = vmatpush1.msra.mxu0 0.0
    %707 = vmatprep.subr.mxu0 0.0
    %708 = vmatpush1.msra.mxu0 0.0
    %709 = vmatprep.subr.mxu0 0.0
    %710 = vmatpush1.msra.mxu0 0.0
    %711 = vmatprep.subr.mxu0 0.0
    %712 = vmatpush1.msra.mxu0 0.0
    %713 = vmatprep.subr.mxu0 0.0
    %714 = vmatpush1.msra.mxu0 0.0
    %715 = vmatprep.subr.mxu0 0.0
    %716 = vmatpush1.msra.mxu0 0.0
    %717 = vmatprep.subr.mxu0 0.0
    %718 = vmatpush1.msra.mxu0 0.0
    %719 = vmatprep.subr.mxu0 0.0
    %720 = vmatpush1.msra.mxu0 0.0
    %721 = vmatprep.subr.mxu0 0.0
    %722 = vmatpush1.msra.mxu0 0.0
    %723 = vmatprep.subr.mxu0 0.0
    %724 = vmatpush1.msra.mxu0 0.0
    %725 = vmatprep.subr.mxu0 0.0
    %726 = vmatpush1.msra.mxu0 0.0
    %727 = vmatprep.subr.mxu0 0.0
    %728 = vmatpush1.msra.mxu0 0.0
    %729 = vmatprep.subr.mxu0 0.0
    %730 = vmatpush1.msra.mxu0 0.0
    %731 = vmatprep.subr.mxu0 0.0
    %732 = vmatpush1.msra.mxu0 0.0
    %733 = vmatprep.subr.mxu0 0.0
    %734 = vmatpush1.msra.mxu0 0.0
    %735 = vmatprep.subr.mxu0 0.0
    %736 = vmatpush1.msra.mxu0 0.0
    %737 = vmatprep.mubr.f32.mxu0 0.0
    %738 = vmatmul.mubr.f32.gmra.mrb[0].mxu0 %v671
    %v739 = vpop.f32.mrb[0].mxu0
    %v740 = vadd.f32 0.0, %v739
    %v741 = vpop.f32.mrb[0].mxu0
    %742 = vdwg.mxu0
    %v744 = vrot.slane %v740, 3
    %v745 = vrot.slane %v740, 4
    %v746 = vrot.slane %v740, 5
    %v747 = vrot.slane %v740, 6
    %v752 = vadd.f32 %v151, %v744
    %v753 = vadd.f32 %v156, %v745
    %v754 = vadd.f32 %v161, %v746
    %v755 = vadd.f32 %v166, %v747
    %v756 = vtanh.pop %v752
    %v757 = vtanh.pop %v753
    %v758 = vtanh.pop %v754
    %v759 = vtanh.pop %v755
    %v764 = vrot.slane %v756, 5
    %v765 = vrot.slane %v757, 4
    %v766 = vsel %vm269, %v765, %v764
    %v767 = vrot.slane %v758, 3
    %v768 = vsel %vm272, %v767, %v766
    %v769 = vrot.slane %v759, 2
    %v770 = vsel %vm275, %v769, %v768
    %v771 = vsel %vm174, %v770, 0
    %773 = vmatprep.subr.mxu0 0.0
    %774 = vmatpush1.msra.mxu0 %v170
    %775 = vmatprep.subr.mxu0 0.0
    %776 = vmatpush1.msra.mxu0 %v171
    %777 = vmatprep.subr.mxu0 0.0
    %778 = vmatpush1.msra.mxu0 %v172
    %779 = vmatprep.subr.mxu0 0.0
    %780 = vmatpush1.msra.mxu0 %v173
    %781 = vmatprep.subr.mxu0 0.0
    %782 = vmatpush1.msra.mxu0 0.0
    %783 = vmatprep.subr.mxu0 0.0
    %784 = vmatpush1.msra.mxu0 0.0
    %785 = vmatprep.subr.mxu0 0.0
    %786 = vmatpush1.msra.mxu0 0.0
    %787 = vmatprep.subr.mxu0 0.0
    %788 = vmatpush1.msra.mxu0 0.0
    %789 = vmatprep.subr.mxu0 0.0
    %790 = vmatpush1.msra.mxu0 0.0
    %791 = vmatprep.subr.mxu0 0.0
    %792 = vmatpush1.msra.mxu0 0.0
    %793 = vmatprep.subr.mxu0 0.0
    %794 = vmatpush1.msra.mxu0 0.0
    %795 = vmatprep.subr.mxu0 0.0
    %796 = vmatpush1.msra.mxu0 0.0
    %797 = vmatprep.subr.mxu0 0.0
    %798 = vmatpush1.msra.mxu0 0.0
    %799 = vmatprep.subr.mxu0 0.0
    %800 = vmatpush1.msra.mxu0 0.0
    %801 = vmatprep.subr.mxu0 0.0
    %802 = vmatpush1.msra.mxu0 0.0
    %803 = vmatprep.subr.mxu0 0.0
    %804 = vmatpush1.msra.mxu0 0.0
    %805 = vmatprep.subr.mxu0 0.0
    %806 = vmatpush1.msra.mxu0 0.0
    %807 = vmatprep.subr.mxu0 0.0
    %808 = vmatpush1.msra.mxu0 0.0
    %809 = vmatprep.subr.mxu0 0.0
    %810 = vmatpush1.msra.mxu0 0.0
    %811 = vmatprep.subr.mxu0 0.0
    %812 = vmatpush1.msra.mxu0 0.0
    %813 = vmatprep.subr.mxu0 0.0
    %814 = vmatpush1.msra.mxu0 0.0
    %815 = vmatprep.subr.mxu0 0.0
    %816 = vmatpush1.msra.mxu0 0.0
    %817 = vmatprep.subr.mxu0 0.0
    %818 = vmatpush1.msra.mxu0 0.0
    %819 = vmatprep.subr.mxu0 0.0
    %820 = vmatpush1.msra.mxu0 0.0
    %821 = vmatprep.subr.mxu0 0.0
    %822 = vmatpush1.msra.mxu0 0.0
    %823 = vmatprep.subr.mxu0 0.0
    %824 = vmatpush1.msra.mxu0 0.0
    %825 = vmatprep.subr.mxu0 0.0
    %826 = vmatpush1.msra.mxu0 0.0
    %827 = vmatprep.subr.mxu0 0.0
    %828 = vmatpush1.msra.mxu0 0.0
    %829 = vmatprep.subr.mxu0 0.0
    %830 = vmatpush1.msra.mxu0 0.0
    %831 = vmatprep.subr.mxu0 0.0
    %832 = vmatpush1.msra.mxu0 0.0
    %833 = vmatprep.subr.mxu0 0.0
    %834 = vmatpush1.msra.mxu0 0.0
    %835 = vmatprep.subr.mxu0 0.0
    %836 = vmatpush1.msra.mxu0 0.0
    %837 = vmatprep.mubr.f32.mxu0 0.0
    %838 = vmatmul.mubr.f32.gmra.mrb[0].mxu0 %v771
    %v839 = vpop.f32.mrb[0].mxu0
    %v840 = vadd.f32 0.0, %v839
    %v841 = vpop.f32.mrb[0].mxu0
    %842 = vdwg.mxu0
    %v844 = vrot.slane %v840, 2
    %v845 = vrot.slane %v840, 3
    %v846 = vrot.slane %v840, 4
    %v847 = vrot.slane %v840, 5
    %v852 = vadd.f32 %v151, %v844
    %v853 = vadd.f32 %v156, %v845
    %v854 = vadd.f32 %v161, %v846
    %v855 = vadd.f32 %v166, %v847
    %v856 = vtanh.pop %v852
    %v857 = vtanh.pop %v853
    %v858 = vtanh.pop %v854
    %v859 = vtanh.pop %v855
    %v864 = vrot.slane %v856, 6
    %v865 = vrot.slane %v857, 5
    %v866 = vsel %vm269, %v865, %v864
    %v867 = vrot.slane %v858, 4
    %v868 = vsel %vm272, %v867, %v866
    %v869 = vrot.slane %v859, 3
    %v870 = vsel %vm275, %v869, %v868
    %v871 = vsel %vm174, %v870, 0
    %873 = vmatprep.subr.mxu0 0.0
    %874 = vmatpush1.msra.mxu0 %v170
    %875 = vmatprep.subr.mxu0 0.0
    %876 = vmatpush1.msra.mxu0 %v171
    %877 = vmatprep.subr.mxu0 0.0
    %878 = vmatpush1.msra.mxu0 %v172
    %879 = vmatprep.subr.mxu0 0.0
    %880 = vmatpush1.msra.mxu0 %v173
    %881 = vmatprep.subr.mxu0 0.0
    %882 = vmatpush1.msra.mxu0 0.0
    %883 = vmatprep.subr.mxu0 0.0
    %884 = vmatpush1.msra.mxu0 0.0
    %885 = vmatprep.subr.mxu0 0.0
    %886 = vmatpush1.msra.mxu0 0.0
    %887 = vmatprep.subr.mxu0 0.0
    %888 = vmatpush1.msra.mxu0 0.0
    %889 = vmatprep.subr.mxu0 0.0
    %890 = vmatpush1.msra.mxu0 0.0
    %891 = vmatprep.subr.mxu0 0.0
    %892 = vmatpush1.msra.mxu0 0.0
    %893 = vmatprep.subr.mxu0 0.0
    %894 = vmatpush1.msra.mxu0 0.0
    %895 = vmatprep.subr.mxu0 0.0
    %896 = vmatpush1.msra.mxu0 0.0
    %897 = vmatprep.subr.mxu0 0.0
    %898 = vmatpush1.msra.mxu0 0.0
    %899 = vmatprep.subr.mxu0 0.0
    %900 = vmatpush1.msra.mxu0 0.0
    %901 = vmatprep.subr.mxu0 0.0
    %902 = vmatpush1.msra.mxu0 0.0
    %903 = vmatprep.subr.mxu0 0.0
    %904 = vmatpush1.msra.mxu0 0.0
    %905 = vmatprep.subr.mxu0 0.0
    %906 = vmatpush1.msra.mxu0 0.0
    %907 = vmatprep.subr.mxu0 0.0
    %908 = vmatpush1.msra.mxu0 0.0
    %909 = vmatprep.subr.mxu0 0.0
    %910 = vmatpush1.msra.mxu0 0.0
    %911 = vmatprep.subr.mxu0 0.0
    %912 = vmatpush1.msra.mxu0 0.0
    %913 = vmatprep.subr.mxu0 0.0
    %914 = vmatpush1.msra.mxu0 0.0
    %915 = vmatprep.subr.mxu0 0.0
    %916 = vmatpush1.msra.mxu0 0.0
    %917 = vmatprep.subr.mxu0 0.0
    %918 = vmatpush1.msra.mxu0 0.0
    %919 = vmatprep.subr.mxu0 0.0
    %920 = vmatpush1.msra.mxu0 0.0
    %921 = vmatprep.subr.mxu0 0.0
    %922 = vmatpush1.msra.mxu0 0.0
    %923 = vmatprep.subr.mxu0 0.0
    %924 = vmatpush1.msra.mxu0 0.0
    %925 = vmatprep.subr.mxu0 0.0
    %926 = vmatpush1.msra.mxu0 0.0
    %927 = vmatprep.subr.mxu0 0.0
    %928 = vmatpush1.msra.mxu0 0.0
    %929 = vmatprep.subr.mxu0 0.0
    %930 = vmatpush1.msra.mxu0 0.0
    %931 = vmatprep.subr.mxu0 0.0
    %932 = vmatpush1.msra.mxu0 0.0
    %933 = vmatprep.subr.mxu0 0.0
    %934 = vmatpush1.msra.mxu0 0.0
    %935 = vmatprep.subr.mxu0 0.0
    %936 = vmatpush1.msra.mxu0 0.0
    %937 = vmatprep.mubr.f32.mxu0 0.0
    %938 = vmatmul.mubr.f32.gmra.mrb[0].mxu0 %v871
    %v939 = vpop.f32.mrb[0].mxu0
    %v940 = vadd.f32 0.0, %v939
    %v941 = vpop.f32.mrb[0].mxu0
    %942 = vdwg.mxu0
    %v944 = vrot.slane %v940, 1
    %v945 = vrot.slane %v940, 2
    %v946 = vrot.slane %v940, 3
    %v947 = vrot.slane %v940, 4
    %v952 = vadd.f32 %v151, %v944
    %v953 = vadd.f32 %v156, %v945
    %v954 = vadd.f32 %v161, %v946
    %v955 = vadd.f32 %v166, %v947
    %v956 = vtanh.pop %v952
    %v957 = vtanh.pop %v953
    %v958 = vtanh.pop %v954
    %v959 = vtanh.pop %v955
    %v964 = vrot.slane %v957, 7
    %v965 = vrot.slane %v958, 6
    %v966 = vsel %vm269, %v965, %v964
    %v967 = vrot.slane %v959, 5
    %v968 = vsel %vm272, %v967, %v966
    %vm971 = vcmask 261127
    %972 = vst.msk [vmem:[#allocation2 - $0x7] sm:$0x80] %vm971, %v956
    %vm973 = vcmask 256000
    %974 = vst.msk [vmem:[#allocation2 + $0x1] sm:$0x7] %vm973, %v968
    // Predicated region
    $region38: #{tpu_custom_call.1} parent=1 // pred_check
      %p975 = pneg %p52
    $region39: #{tpu_custom_call.1} parent=1 // pred_check_branch
      %977 = sbr.rel (%p975) target = $region41
    $region40: #{tpu_custom_call.1} parent=1 // pred_region
      %v978 = vld [vmem:[%s4] sm:$0xff]
      %v979 = vld [vmem:[%s4 + $0x8] sm:$0xff]
      %v980 = vld [vmem:[%s4 + $0x10] sm:$0xff]
      %v981 = vld [vmem:[%s4 + $0x18] sm:$0xff]
      %v982 = vld [vmem:[%s5] sm:$0x1]
      %v984 = vlaneseq
      %v985 = vshrl.u32 %v984, 7
      %v986 = vsub.s32 0, %v985
      %v987 = vrot.slane %v982, %v986
      %v989 = vrot.slane %v956, 7
      %v990 = vrot.slane %v957, 6
      %v991 = vsel %vm269, %v990, %v989
      %v992 = vrot.slane %v958, 5
      %v993 = vsel %vm272, %v992, %v991
      %v994 = vrot.slane %v959, 4
      %v995 = vsel %vm275, %v994, %v993
      %v996 = vsel %vm174, %v995, 0
      %998 = vmatprep.subr.mxu0 0.0
      %999 = vmatpush1.msra.mxu0 %v978
      %1000 = vmatprep.subr.mxu0 0.0
      %1001 = vmatpush1.msra.mxu0 %v979
      %1002 = vmatprep.subr.mxu0 0.0
      %1003 = vmatpush1.msra.mxu0 %v980
      %1004 = vmatprep.subr.mxu0 0.0
      %1005 = vmatpush1.msra.mxu0 %v981
      %1006 = vmatprep.subr.mxu0 0.0
      %1007 = vmatpush1.msra.mxu0 0.0
      %1008 = vmatprep.subr.mxu0 0.0
      %1009 = vmatpush1.msra.mxu0 0.0
      %1010 = vmatprep.subr.mxu0 0.0
      %1011 = vmatpush1.msra.mxu0 0.0
      %1012 = vmatprep.subr.mxu0 0.0
      %1013 = vmatpush1.msra.mxu0 0.0
      %1014 = vmatprep.subr.mxu0 0.0
      %1015 = vmatpush1.msra.mxu0 0.0
      %1016 = vmatprep.subr.mxu0 0.0
      %1017 = vmatpush1.msra.mxu0 0.0
      %1018 = vmatprep.subr.mxu0 0.0
      %1019 = vmatpush1.msra.mxu0 0.0
      %1020 = vmatprep.subr.mxu0 0.0
      %1021 = vmatpush1.msra.mxu0 0.0
      %1022 = vmatprep.subr.mxu0 0.0
      %1023 = vmatpush1.msra.mxu0 0.0
      %1024 = vmatprep.subr.mxu0 0.0
      %1025 = vmatpush1.msra.mxu0 0.0
      %1026 = vmatprep.subr.mxu0 0.0
      %1027 = vmatpush1.msra.mxu0 0.0
      %1028 = vmatprep.subr.mxu0 0.0
      %1029 = vmatpush1.msra.mxu0 0.0
      %1030 = vmatprep.subr.mxu0 0.0
      %1031 = vmatpush1.msra.mxu0 0.0
      %1032 = vmatprep.subr.mxu0 0.0
      %1033 = vmatpush1.msra.mxu0 0.0
      %1034 = vmatprep.subr.mxu0 0.0
      %1035 = vmatpush1.msra.mxu0 0.0
      %1036 = vmatprep.subr.mxu0 0.0
      %1037 = vmatpush1.msra.mxu0 0.0
      %1038 = vmatprep.subr.mxu0 0.0
      %1039 = vmatpush1.msra.mxu0 0.0
      %1040 = vmatprep.subr.mxu0 0.0
      %1041 = vmatpush1.msra.mxu0 0.0
      %1042 = vmatprep.subr.mxu0 0.0
      %1043 = vmatpush1.msra.mxu0 0.0
      %1044 = vmatprep.subr.mxu0 0.0
      %1045 = vmatpush1.msra.mxu0 0.0
      %1046 = vmatprep.subr.mxu0 0.0
      %1047 = vmatpush1.msra.mxu0 0.0
      %1048 = vmatprep.subr.mxu0 0.0
      %1049 = vmatpush1.msra.mxu0 0.0
      %1050 = vmatprep.subr.mxu0 0.0
      %1051 = vmatpush1.msra.mxu0 0.0
      %1052 = vmatprep.subr.mxu0 0.0
      %1053 = vmatpush1.msra.mxu0 0.0
      %1054 = vmatprep.subr.mxu0 0.0
      %1055 = vmatpush1.msra.mxu0 0.0
      %1056 = vmatprep.subr.mxu0 0.0
      %1057 = vmatpush1.msra.mxu0 0.0
      %1058 = vmatprep.subr.mxu0 0.0
      %1059 = vmatpush1.msra.mxu0 0.0
      %1060 = vmatprep.subr.mxu0 0.0
      %1061 = vmatpush1.msra.mxu0 0.0
      %1062 = vmatprep.mubr.f32.mxu0 0.0
      %1063 = vmatmul.mubr.f32.gmra.mrb[0].mxu0 %v996
      %v1064 = vpop.f32.mrb[0].mxu0
      %v1065 = vadd.f32 %v987, %v1064
      %v1066 = vpop.f32.mrb[0].mxu0
      %1067 = vdwg.mxu0
      %vm1068 = vcmask 60416
      %v1069 = vsel %vm1068, %v1065, -inf
      %1070 = vmax.xlane.f32.xlu0 %v1069
      %v1071 = vpop.xlane.xlu0 %1070
      %v1072 = vsub.f32 %v1065, %v1071
      %v1073 = vmul.f32 %v1072, 1.442695
      %v1074 = vpow.pop %v1073
      %v1075 = vsel %vm1068, %v1074, 0.0
      %1076 = vadd.xlane.f32.xlu0 %v1075
      %v1077 = vpop.xlane.xlu0 %1076
      %v1078 = vlog2.pop %v1077
      %v1079 = vmul.f32 %v1078, 0.6931472
      %v1080 = vsub.f32 %v1072, %v1079
      %1081 = vst.msk [vmem:[#allocation8] sm:$0xf] %vm1068, %v1080
    $region41: #{tpu_custom_call.1} parent=1 // pred_fallthru
      _
    // Predicated region
    $region42: #{tpu_custom_call.1} parent=1 // pred_check
      _
    $region43: #{tpu_custom_call.1} parent=1 // pred_check_branch
      %1083 = sbr.rel (0) target = $region45
    $region44: #{tpu_custom_call.1} parent=1 // pred_region
      %s1085 = ssub.s32 64, 64
      %1086 = vsyncadd [#allocation5], %s1085
      %s1088 = sshll.u32 [#allocation8], 4
      %s1089 = int_to_ptr.vmem [resolvable:$true] %s1088
      %1091 = dma.vmem_to_hbm [thread:$0]  %s1089, 64, %s6, [#allocation5]
    $region45: #{tpu_custom_call.1} parent=1 // pred_fallthru
      _
    // Predicated region
    $region46: #{tpu_custom_call.1} parent=1 // pred_check
      _
    $region47: #{tpu_custom_call.1} parent=1 // pred_check_branch
      %1093 = sbr.rel (0) target = $region49
    $region48: #{tpu_custom_call.1} parent=1 // pred_region
      %1094 = dma.done [#allocation5], 64
    $region49: #{tpu_custom_call.1} parent=1 // pred_fallthru
      _
    %1095 = vsyncpa [#allocation4], 1
    %1096 = vsyncpa [#allocation7], 1
    %1097 = vsyncpa [#allocation5], 1

</llo_original>
